<compile_context>
chip_gen: v6e
topology: v6e:2x2x1
jax: 0.10.0
libtpu: 0.0.40
codegen_flags: <defaults>
</compile_context>

<pallas_src>
import functools

import jax
import jax.numpy as jnp
from jax.experimental import pallas as pl
from jax.experimental.pallas import tpu as pltpu


def _round_up(x, m):
    return (x + m - 1) // m * m


def _vmem_limits():
    """(dma/temporary budget, compiler vmem limit) in bytes, per TensorCore."""
    cap = None
    try:
        cap = getattr(pltpu.get_tpu_info(), "vmem_capacity_bytes", None)
    except Exception:  # pragma: no cover - conservative fallback off-TPU
        cap = None
    if not cap:
        cap = 64 * 1024 * 1024          # conservative: v7x per-core size
    limit = max(32 * 1024 * 1024, min(cap * 3 // 4, 96 * 1024 * 1024))
    # Clamp the sizing budget so even a mis-reported capacity cannot push the
    # double-buffered input blocks past a 64 MiB per-core VMEM.
    budget = min(limit // 2, 32 * 1024 * 1024)
    return budget, limit


def _pick_tile_b(batch, feat, itemsize, *, vmem_budget_bytes, chunk,
                 max_tile=4096):
    """Largest sublane-aligned batch tile whose working set fits the budget."""
    sub = 8 * max(1, 4 // itemsize)        # sublane multiple: f32->8, bf16->16
    d_lanes = _round_up(max(feat, 1), 128)  # lane-padded feature width in VMEM
    # Per batch-row VMEM cost:
    #   2 inputs x 2 pipeline buffers of the (tile_b, D) block
    # + ~4 f32 chunk-sized temporaries from the feature-chunked reduction
    # + label/output blocks and small per-row f32 scratch (lane-padded).
    bytes_per_row = 4 * d_lanes * itemsize + 4 * chunk * 4 + 4096
    t = max(sub, vmem_budget_bytes // bytes_per_row)
    t = max(sub, (min(t, max_tile) // sub) * sub)
    return min(t, _round_up(batch, sub))


def _contrastive_kernel(o1_ref, o2_ref, lbl_ref, out_ref, *,
                        margin, batch, tile_b, feat, chunk):
    i = pl.program_id(0)

    # Squared Euclidean distance over the feature axis, accumulated per chunk
    # so intermediates are capped at ~chunk * tile_b f32 regardless of D.
    # Upcast happens in-kernel on the VPU; HBM traffic stays in native dtype.
    d2 = jnp.zeros((tile_b, 1), jnp.float32)
    for c0 in range(0, feat, chunk):
        c1 = min(feat, c0 + chunk)
        a = o1_ref[:, c0:c1].astype(jnp.float32)
        b = o2_ref[:, c0:c1].astype(jnp.float32)
        diff = a - b
        d2 = d2 + jnp.sum(diff * diff, axis=-1, keepdims=True)

    dist = jnp.sqrt(d2)                                       # (tile_b, 1)
    lbl = lbl_ref[...].astype(jnp.float32)                    # (tile_b, 1)
    hinge = jnp.maximum(margin - dist, 0.0)
    # Use d2 directly for the positive term (cheaper than (sqrt(d2))**2).
    loss = (1.0 - lbl) * d2 + lbl * (hinge * hinge)           # (tile_b, 1)

    # Interior blocks: plain store (Pallas clips the last block's writeback,
    # so the tail mask below is only needed -- and only paid for -- there).
    @pl.when((i + 1) * tile_b <= batch)
    def _():
        out_ref[...] = loss

    @pl.when((i + 1) * tile_b > batch)
    def _():
        row = jax.lax.broadcasted_iota(jnp.int32, (tile_b, 1), 0)
        out_ref[...] = jnp.where(i * tile_b + row < batch, loss, 0.0)


def contrastive_loss(output1, output2, label, *, margin=2.5, tile_b=None):
    """Scalar contrastive loss matching the PyTorch forward (Euclidean metric)."""
    B, D = output1.shape
    itemsize = jnp.dtype(output1.dtype).itemsize
    chunk = min(_round_up(D, 128), 512)

    budget, limit = _vmem_limits()
    if tile_b is None:
        tile_b = _pick_tile_b(B, D, itemsize,
                              vmem_budget_bytes=budget, chunk=chunk)
    num_blocks = pl.cdiv(B, tile_b)

    # Labels are tiny: a (B, 1) f32 column alongside each batch tile.
    lbl2d = label.reshape(B, 1).astype(jnp.float32)

    kernel = functools.partial(
        _contrastive_kernel, margin=float(margin), batch=B, tile_b=tile_b,
        feat=D, chunk=chunk)

    # Deeper buffering only when per-step blocks are small (hides DMA issue
    # latency for small-D workloads) and there are enough steps to benefit.
    block_bytes = tile_b * _round_up(D, 128) * itemsize
    deep = block_bytes < (1 << 20) and num_blocks > 3

    def _big_spec():
        if deep:
            return pl.BlockSpec((tile_b, D), lambda i: (i, 0),
                                pipeline_mode=pl.Buffered(3))
        return pl.BlockSpec((tile_b, D), lambda i: (i, 0))

    per_row = pl.pallas_call(
        kernel,
        out_shape=jax.ShapeDtypeStruct((B, 1), jnp.float32),
        grid_spec=pltpu.PrefetchScalarGridSpec(
            num_scalar_prefetch=0,
            grid=(num_blocks,),
            in_specs=[
                _big_spec(),
                _big_spec(),
                pl.BlockSpec((tile_b, 1), lambda i: (i, 0)),
            ],
            out_specs=pl.BlockSpec((tile_b, 1), lambda i: (i, 0)),
        ),
        compiler_params=pltpu.CompilerParams(
            dimension_semantics=("parallel",),
            vmem_limit_bytes=limit,
        ),
        cost_estimate=pl.CostEstimate(
            flops=3 * B * D + 10 * B,
            transcendentals=B,
            bytes_accessed=2 * B * D * itemsize + 8 * B,
        ),
    )(output1, output2, lbl2d)

    # Tiny final reduction outside the kernel: per-row losses -> scalar mean.
    return jnp.sum(per_row) / jnp.float32(B)


def _reference(output1, output2, label, margin=2.5):
    dist = jnp.sqrt(jnp.sum((output1 - output2) ** 2, axis=-1))
    label = label.astype(jnp.float32)
    loss = (1.0 - label) * dist ** 2 + label * jnp.maximum(margin - dist, 0.0) ** 2
    return jnp.mean(loss)


if __name__ == "__main__":
    key = jax.random.PRNGKey(0)
    k1, k2, k3 = jax.random.split(key, 3)

    B, D = 16, 32
    output1 = jax.random.normal(k1, (B, D), dtype=jnp.float32)
    output2 = jax.random.normal(k2, (B, D), dtype=jnp.float32)
    label = jax.random.bernoulli(k3, 0.5, (B,)).astype(jnp.float32)

    loss = contrastive_loss(output1, output2, label, margin=2.5)
    jax.block_until_ready(loss)

    ref = _reference(output1, output2, label, margin=2.5)
    assert jnp.allclose(loss, ref, rtol=1e-5, atol=1e-5), (loss, ref)

    print("KERNEL_OK")
</pallas_src>

<mosaic_0001>
module attributes {stable_mosaic.version = 11 : i64} {
  func.func @_contrastive_kernel(%arg0: i32, %arg1: memref<16x32xf32, #tpu.memory_space<vmem>>, %arg2: memref<16x32xf32, #tpu.memory_space<vmem>>, %arg3: memref<16x1xf32, #tpu.memory_space<vmem>>, %arg4: memref<16x1xf32, #tpu.memory_space<vmem>>) attributes {dimension_semantics = [#tpu.dimension_semantics<parallel>], iteration_bounds = array<i64: 1>, scalar_prefetch = 0 : i64, scratch_operands = 0 : i64, tpu.core_type = #tpu.core_type<tc>, window_params = [{transform_indices = @transform_0, window_bounds = array<i64: 16, 32>}, {transform_indices = @transform_1, window_bounds = array<i64: 16, 32>}, {transform_indices = @transform_2, window_bounds = array<i64: 16, 1>}, {transform_indices = @transform_3, window_bounds = array<i64: 16, 1>}]} {
    %cst = arith.constant 0.000000e+00 : f32
    %0 = vector.broadcast %cst : f32 to vector<16x1xf32>
    %c0 = arith.constant 0 : index
    %c0_0 = arith.constant 0 : index
    %1 = vector.load %arg1[%c0, %c0_0] : memref<16x32xf32, #tpu.memory_space<vmem>>, vector<16x32xf32>
    %c0_1 = arith.constant 0 : index
    %c0_2 = arith.constant 0 : index
    %2 = vector.load %arg2[%c0_1, %c0_2] : memref<16x32xf32, #tpu.memory_space<vmem>>, vector<16x32xf32>
    %3 = arith.subf %1, %2 : vector<16x32xf32>
    %4 = arith.mulf %3, %3 : vector<16x32xf32>
    %cst_3 = arith.constant dense<0.000000e+00> : vector<16xf32>
    %5 = vector.multi_reduction <add>, %4, %cst_3 [1] : vector<16x32xf32> to vector<16xf32>
    %6 = vector.shape_cast %5 : vector<16xf32> to vector<16x1xf32>
    %7 = arith.addf %0, %6 : vector<16x1xf32>
    %8 = math.sqrt %7 : vector<16x1xf32>
    %c0_4 = arith.constant 0 : index
    %c0_5 = arith.constant 0 : index
    %9 = vector.load %arg3[%c0_4, %c0_5] : memref<16x1xf32, #tpu.memory_space<vmem>>, vector<16x1xf32>
    %cst_6 = arith.constant 2.500000e+00 : f32
    %10 = vector.broadcast %cst_6 : f32 to vector<16x1xf32>
    %11 = arith.subf %10, %8 : vector<16x1xf32>
    %cst_7 = arith.constant 0.000000e+00 : f32
    %12 = vector.broadcast %cst_7 : f32 to vector<16x1xf32>
    %13 = arith.maximumf %11, %12 : vector<16x1xf32>
    %cst_8 = arith.constant 1.000000e+00 : f32
    %14 = vector.broadcast %cst_8 : f32 to vector<16x1xf32>
    %15 = arith.subf %14, %9 : vector<16x1xf32>
    %16 = arith.mulf %15, %7 : vector<16x1xf32>
    %17 = arith.mulf %13, %13 : vector<16x1xf32>
    %18 = arith.mulf %9, %17 : vector<16x1xf32>
    %19 = arith.addf %16, %18 : vector<16x1xf32>
    %c1_i32 = arith.constant 1 : i32
    %20 = arith.addi %arg0, %c1_i32 : i32
    %c16_i32 = arith.constant 16 : i32
    %21 = arith.muli %20, %c16_i32 : i32
    %c16_i32_9 = arith.constant 16 : i32
    %22 = arith.cmpi sle, %21, %c16_i32_9 : i32
    %23 = arith.extui %22 : i1 to i32
    %c0_i32 = arith.constant 0 : i32
    %24 = arith.cmpi ne, %23, %c0_i32 : i32
    scf.if %24 {
      %c0_14 = arith.constant 0 : index
      %c0_15 = arith.constant 0 : index
      %30 = vector.load %arg4[%c0_14, %c0_15] : memref<16x1xf32, #tpu.memory_space<vmem>>, vector<16x1xf32>
      tpu.vector_store %arg4[%c0_14, %c0_15], %19 {strides = array<i32>} : memref<16x1xf32, #tpu.memory_space<vmem>>, vector<16x1xf32>,
    } else {
    }
    %c1_i32_10 = arith.constant 1 : i32
    %25 = arith.addi %arg0, %c1_i32_10 : i32
    %c16_i32_11 = arith.constant 16 : i32
    %26 = arith.muli %25, %c16_i32_11 : i32
    %c16_i32_12 = arith.constant 16 : i32
    %27 = arith.cmpi sgt, %26, %c16_i32_12 : i32
    %28 = arith.extui %27 : i1 to i32
    %c0_i32_13 = arith.constant 0 : i32
    %29 = arith.cmpi ne, %28, %c0_i32_13 : i32
    scf.if %29 {
      %30 = tpu.iota {dimensions = array<i32: 0>} : vector<16x1xi32>
      %c16_i32_14 = arith.constant 16 : i32
      %31 = arith.muli %arg0, %c16_i32_14 : i32
      %32 = vector.broadcast %31 : i32 to vector<16x1xi32>
      %33 = arith.addi %32, %30 : vector<16x1xi32>
      %c16_i32_15 = arith.constant 16 : i32
      %34 = vector.broadcast %c16_i32_15 : i32 to vector<16x1xi32>
      %35 = arith.cmpi slt, %33, %34 : vector<16x1xi32>
      %cst_16 = arith.constant 0.000000e+00 : f32
      %36 = vector.broadcast %cst_16 : f32 to vector<16x1xf32>
      %37 = arith.select %35, %19, %36 : vector<16x1xi1>, vector<16x1xf32>
      %c0_17 = arith.constant 0 : index
      %c0_18 = arith.constant 0 : index
      %38 = vector.load %arg4[%c0_17, %c0_18] : memref<16x1xf32, #tpu.memory_space<vmem>>, vector<16x1xf32>
      tpu.vector_store %arg4[%c0_17, %c0_18], %37 {strides = array<i32>} : memref<16x1xf32, #tpu.memory_space<vmem>>, vector<16x1xf32>,
    } else {
    }
    return
  }
  func.func @transform_0(%arg0: i32) -> (i32, i32) {
    %c0_i32 = arith.constant 0 : i32
    %c0_i32_0 = arith.constant 0 : i32
    return %arg0, %c0_i32 : i32, i32
  }
  func.func @transform_1(%arg0: i32) -> (i32, i32) {
    %c0_i32 = arith.constant 0 : i32
    %c0_i32_0 = arith.constant 0 : i32
    return %arg0, %c0_i32 : i32, i32
  }
  func.func @transform_2(%arg0: i32) -> (i32, i32) {
    %c0_i32 = arith.constant 0 : i32
    %c0_i32_0 = arith.constant 0 : i32
    return %arg0, %c0_i32 : i32, i32
  }
  func.func @transform_3(%arg0: i32) -> (i32, i32) {
    %c0_i32 = arith.constant 0 : i32
    %c0_i32_0 = arith.constant 0 : i32
    return %arg0, %c0_i32 : i32, i32
  }
}

</mosaic_0001>

<llo_original>
// kernel: tpu_custom_call.1
$region0: #{tpu_custom_call.1}
  #allocation0 [shape = 'u32[]', space=smem, size = 0x4, offset = 0x4, fixed_abs, tag = 'smem constant byte address 0x4 - core index']
  #allocation1 [shape = 'u32[144,128]{1,0:T(1,128)}', space=vmem, size = 0x12000, scoped, tag = 'internal scratch']
  %s0 = inlined_call_operand.vmem [shape: f32[16,32], index: 0, kind: input, shape index: {}]
  %s1 = inlined_call_operand.hbm [shape: f32[16,32], index: 1, kind: input, shape index: {}]
  %s2 = inlined_call_operand.vmem [shape: f32[16,1], index: 2, kind: input, shape index: {}]
  %s3 = inlined_call_operand.vmem [shape: f32[16,1], index: 3, kind: output, shape index: {}]
  %s4 = sld [smem:[#allocation0]]
  $region34: #{tpu_custom_call.1} parent=0
    _
  %s6 = ssub.s32 1, %s4
  %s7 = scalar_select 0, %s6, %s4
  $region1: #{tpu_custom_call.1} parent=0
    #allocation2 [shape = 'u8[8192]{0}', space=vmem, size = 0x2000, scoped, tag = 'input window, operand 1, single buffered']
    #allocation3 [shape = 's32[1]{0}', space=sflag, size = 0x4, scoped, tag = 'scoped memory for tpu_custom_call.1']
    %8 = vsyncpa [#allocation3], 0
    // Predicated region
    $region2: #{tpu_custom_call.1} parent=1 // pred_check
      _
    $region3: #{tpu_custom_call.1} parent=1 // pred_check_branch
      %10 = sbr.rel (0) target = $region5
    $region4: #{tpu_custom_call.1} parent=1 // pred_region
      _
    $region5: #{tpu_custom_call.1} parent=1 // pred_fallthru
      _
    // Predicated region
    $region6: #{tpu_custom_call.1} parent=1 // pred_check
      _
    $region7: #{tpu_custom_call.1} parent=1 // pred_check_branch
      %12 = sbr.rel (0) target = $region9
    $region8: #{tpu_custom_call.1} parent=1 // pred_region
      %s14 = ssub.s32 256, 256
      %15 = vsyncadd [#allocation3], %s14
      %s16 = sshll.u32 [#allocation2], 4
      %s17 = int_to_ptr.vmem [resolvable:$true] %s16
      %22 = dma.hbm_to_vmem [thread:$0]  %s1, 256, %s17, [#allocation3], 128, 128, 8
    $region9: #{tpu_custom_call.1} parent=1 // pred_fallthru
      _
    // Predicated region
    $region10: #{tpu_custom_call.1} parent=1 // pred_check
      _
    $region11: #{tpu_custom_call.1} parent=1 // pred_check_branch
      %24 = sbr.rel (0) target = $region13
    $region12: #{tpu_custom_call.1} parent=1 // pred_region
      _
    $region13: #{tpu_custom_call.1} parent=1 // pred_fallthru
      _
    // Predicated region
    $region14: #{tpu_custom_call.1} parent=1 // pred_check
      _
    $region15: #{tpu_custom_call.1} parent=1 // pred_check_branch
      %26 = sbr.rel (0) target = $region17
    $region16: #{tpu_custom_call.1} parent=1 // pred_region
      %27 = dma.done [#allocation3], 256
    $region17: #{tpu_custom_call.1} parent=1 // pred_fallthru
      _
    %v28 = vld [vmem:[%s0] sm:$0xff]
    %v29 = vld [vmem:[%s0 + $0x8] sm:$0xff]
    %v30 = vld [vmem:[#allocation2] sm:$0xff]
    %v31 = vld [vmem:[#allocation2 + $0x8] sm:$0xff]
    %v32 = vsub.f32 %v28, %v30
    %v33 = vsub.f32 %v29, %v31
    %v34 = vmul.f32 %v32, %v32
    %v35 = vmul.f32 %v33, %v33
    %vm36 = vcmask 261120
    %v37 = vsel %vm36, %v34, 0.0
    %38 = vadd.xlane.f32.xlu0 %v37
    %v39 = vpop.xlane.xlu0 %38
    %v40 = vsel %vm36, %v35, 0.0
    %41 = vadd.xlane.f32.xlu0 %v40
    %v42 = vpop.xlane.xlu0 %41
    %v43 = vadd.f32 %v39, 0.0
    %v44 = vadd.f32 %v42, 0.0
    %v45 = vrsqrt.pop %v43
    %v46 = vmul.f32 %v43, %v45
    %vm47 = vcmp.eq.f32.partialorder %v43, inf
    %v48 = vsel %vm47, %v43, %v46
    %vm49 = vcmp.eq.f32.partialorder %v43, 0.0
    %v50 = vand.u32 %v43, 2147483648
    %v51 = vsel %vm49, %v50, %v48
    %v52 = vrsqrt.pop %v44
    %v53 = vmul.f32 %v44, %v52
    %vm54 = vcmp.eq.f32.partialorder %v44, inf
    %v55 = vsel %vm54, %v44, %v53
    %vm56 = vcmp.eq.f32.partialorder %v44, 0.0
    %v57 = vand.u32 %v44, 2147483648
    %v58 = vsel %vm56, %v57, %v55
    %v59 = vld [vmem:[%s2] sm:$0xff]
    %v60 = vld [vmem:[%s2 + $0x8] sm:$0xff]
    %v61 = vsub.f32 2.5, %v51
    %v62 = vsub.f32 2.5, %v58
    %v63 = vmax.f32 %v61, 0.0
    %v64 = vmax.f32 %v62, 0.0
    %v65 = vsub.f32 1.0, %v59
    %v66 = vsub.f32 1.0, %v60
    %v67 = vmul.f32 %v65, %v43
    %v68 = vmul.f32 %v66, %v44
    %v69 = vmul.f32 %v63, %v63
    %v70 = vmul.f32 %v64, %v64
    %v71 = vmul.f32 %v59, %v69
    %v72 = vmul.f32 %v60, %v70
    %v73 = vadd.f32 %v67, %v71
    %v74 = vadd.f32 %v68, %v72
    %s75 = sadd.s32 0, 1
    %s76 = smul.u32 %s75, 16
    %p77 = scmp.le.s32.totalorder %s76, 16
    // Predicated region
    $region18: #{tpu_custom_call.1} parent=1 // pred_check
      %p78 = pneg %p77
    $region19: #{tpu_custom_call.1} parent=1 // pred_check_branch
      %80 = sbr.rel (%p78) target = $region21
    $region20: #{tpu_custom_call.1} parent=1 // pred_region
      %vm81 = vcmask 7168
      %82 = vst.msk [vmem:[%s3] sm:$0xff] %vm81, %v73
      %83 = vst.msk [vmem:[%s3 + $0x8] sm:$0xff] %vm81, %v74
    $region21: #{tpu_custom_call.1} parent=1 // pred_fallthru
      _
    %p84 = scmp.gt.s32.totalorder %s76, 16
    // Predicated region
    $region22: #{tpu_custom_call.1} parent=1 // pred_check
      %p85 = pneg %p84
    $region23: #{tpu_custom_call.1} parent=1 // pred_check_branch
      %87 = sbr.rel (%p85) target = $region25
    $region24: #{tpu_custom_call.1} parent=1 // pred_region
      %v88 = vlaneseq
      %v89 = vshrl.u32 %v88, 7
      %v90 = vadd.s32 %v89, 8
      %s91 = smul.u32 0, 16
      %v92 = vstv %s91
      %v93 = vadd.s32 %v92, %v89
      %v94 = vadd.s32 %v92, %v90
      %vm95 = vcmp.lt.s32.totalorder %v93, 16
      %vm96 = vcmp.lt.s32.totalorder %v94, 16
      %v97 = vsel %vm95, %v73, 0.0
      %v98 = vsel %vm96, %v74, 0.0
      %vm99 = vcmask 7168
      %100 = vst.msk [vmem:[%s3] sm:$0xff] %vm99, %v97
      %101 = vst.msk [vmem:[%s3 + $0x8] sm:$0xff] %vm99, %v98
    $region25: #{tpu_custom_call.1} parent=1 // pred_fallthru
      _
    // Predicated region
    $region26: #{tpu_custom_call.1} parent=1 // pred_check
      _
    $region27: #{tpu_custom_call.1} parent=1 // pred_check_branch
      %103 = sbr.rel (0) target = $region29
    $region28: #{tpu_custom_call.1} parent=1 // pred_region
      _
    $region29: #{tpu_custom_call.1} parent=1 // pred_fallthru
      _
    // Predicated region
    $region30: #{tpu_custom_call.1} parent=1 // pred_check
      _
    $region31: #{tpu_custom_call.1} parent=1 // pred_check_branch
      %105 = sbr.rel (0) target = $region33
    $region32: #{tpu_custom_call.1} parent=1 // pred_region
      _
    $region33: #{tpu_custom_call.1} parent=1 // pred_fallthru
      _
    %106 = vsyncpa [#allocation3], 1

</llo_original>
